<compile_context>
chip_gen: v7x
topology: tpu7x:2x2x1
jax: 0.10.0
libtpu: 0.0.40
codegen_flags: <defaults>
</compile_context>

<pallas_src>
import jax
import jax.numpy as jnp
from jax import lax
from jax.experimental import pallas as pl
from jax.experimental.pallas import tpu as pltpu


_BLOCK_VMEM_BUDGET = 36 * 1024 * 1024   # conservative block budget: fits v5e/v6e/v7x
_VMEM_LIMIT_BYTES = 48 * 1024 * 1024    # scoped VMEM limit handed to Mosaic


def _round_up(x, m):
    return ((x + m - 1) // m) * m


def _choose_tiles(B, T, C, cls_pad, x_itemsize, w_total_bytes):
    """Largest (tile_b, tile_t) whose double-buffered blocks fit the VMEM budget."""
    # Resident weight + bias (counted double-buffered; see Buffered(1) TODO above).
    fixed = 2 * w_total_bytes + 2 * 8 * cls_pad * 4
    avail = _BLOCK_VMEM_BUDGET - fixed
    # Per batch-row, independent of the time tile: pooled + logit f32 blocks, x2 buffers.
    out_row = 2 * (C + cls_pad) * 4
    # Per (row, time step): double-buffered feats + one f32 temp for the upcast+reduce.
    x_row_t = 2 * C * x_itemsize + C * 4

    min_tb = B if B <= 8 else 8
    min_tt = T if T <= 8 else 8
    if avail <= 0 or min_tb * (out_row + min_tt * x_row_t) > avail:
        # Degenerate (huge C / cls_num): smallest legal tile, rely on the raised limit.
        return min_tb, min_tt

    if B <= 8:
        tb = B
    else:
        # >=4 batch grid steps (megacore on v7x + pipeline overlap), tiles stay multi-MiB.
        tb = max(8, min(512, _round_up(pl.cdiv(B, 4), 8)))

    def full_t_bytes(tb_):
        return tb_ * (out_row + T * x_row_t)

    while B > 8 and tb > 8 and full_t_bytes(tb) > avail:
        tb = max(8, (tb // 2) // 8 * 8)

    if full_t_bytes(tb) <= avail:
        return tb, T                     # no time tiling needed

    # Full-T rows don't fit even at the minimum tb: tile the time axis too.
    tt = (avail // tb - out_row) // x_row_t
    tt = max(8, (tt // 8) * 8)
    return tb, min(tt, T)


def _make_kernel(T, tt):
    inv_t = 1.0 / float(T)
    needs_t_mask = (T % tt) != 0

    def kernel(x_ref, w_ref, b_ref, pooled_ref, logit_ref):
        t = pl.program_id(1)

        @pl.when(t == 0)
        def _():
            pooled_ref[...] = jnp.zeros_like(pooled_ref)

        x = x_ref[...]
        if needs_t_mask:
            # Last (partial) time block: zero rows past T before reducing.
            tidx = lax.broadcasted_iota(jnp.int32, x.shape, 1)
            x = jnp.where(t * tt + tidx < T, x, jnp.zeros_like(x))
        # f32-accumulated partial sum of this time chunk (no full-tile f32 copy).
        pooled_ref[...] += jnp.sum(x, axis=1, dtype=jnp.float32)

        @pl.when(t == pl.num_programs(1) - 1)
        def _():
            pooled = pooled_ref[...] * inv_t                 # mean over T
            pooled_ref[...] = pooled
            logit = jnp.dot(pooled.astype(w_ref.dtype), w_ref[...],
                            preferred_element_type=jnp.float32)
            logit_ref[...] = (logit + b_ref[...].astype(jnp.float32)
                              ).astype(logit_ref.dtype)

    return kernel


def classifier_forward(feats, params, *, tile_b=None, tile_t=None):
    """feats: (B, T, C). Returns (pooled (B, C) f32, logits (B, cls_num) f32).

    bf16 feats/weights are supported (recommended: halves the dominant HBM
    traffic); the time reduction and the matmul always accumulate in f32.
    """
    B, T, C = feats.shape
    w = params["w"]                       # (C, cls_num): pre-transposed Linear weight
    b = params["b"]                       # (1, cls_num)
    cls_num = w.shape[1]

    # Lane-dense logits: pad the class dim to a multiple of 128 (tiny, one-time).
    cls_pad = _round_up(cls_num, 128)
    if cls_pad != cls_num:
        w = jnp.pad(w, ((0, 0), (0, cls_pad - cls_num)))
        b = jnp.pad(b, ((0, 0), (0, cls_pad - cls_num)))

    tb, tt = _choose_tiles(B, T, C, cls_pad, feats.dtype.itemsize,
                           w.size * w.dtype.itemsize)
    if tile_b is not None:                # test/override hook
        tb = B if tile_b >= B else max(8, (tile_b // 8) * 8)
    if tile_t is not None:
        tt = T if tile_t >= T else max(8, (tile_t // 8) * 8)

    grid = (pl.cdiv(B, tb), pl.cdiv(T, tt))   # no wrapper-side padding of feats

    pooled, logit = pl.pallas_call(
        _make_kernel(T, tt),
        out_shape=(
            jax.ShapeDtypeStruct((B, C), jnp.float32),
            jax.ShapeDtypeStruct((B, cls_pad), jnp.float32),
        ),
        grid=grid,
        in_specs=[
            pl.BlockSpec((tb, tt, C), lambda i, t: (i, t, 0)),   # streamed feats tile
            pl.BlockSpec((C, cls_pad), lambda i, t: (0, 0)),     # resident weight
            pl.BlockSpec((1, cls_pad), lambda i, t: (0, 0)),     # resident bias
        ],
        out_specs=(
            pl.BlockSpec((tb, C), lambda i, t: (i, 0)),          # pooled (f32 accumulator)
            pl.BlockSpec((tb, cls_pad), lambda i, t: (i, 0)),    # logits (written at last t)
        ),
        compiler_params=pltpu.CompilerParams(
            dimension_semantics=("parallel", "arbitrary"),
            vmem_limit_bytes=_VMEM_LIMIT_BYTES,
        ),
    )(feats, w, b)

    if cls_pad != cls_num:
        logit = logit[:, :cls_num]
    return pooled, logit


def init_params(key, in_dim, cls_num, dtype=jnp.float32):
    """Matches init_weights(): Linear -> xavier_normal weight, zero bias."""
    std = (2.0 / (in_dim + cls_num)) ** 0.5
    w = (std * jax.random.normal(key, (in_dim, cls_num), dtype=jnp.float32)).astype(dtype)
    b = jnp.zeros((1, cls_num), dtype)
    return {"w": w, "b": b}


if __name__ == "__main__":
    key = jax.random.PRNGKey(0)
    k1, k2, k3, k4 = jax.random.split(key, 4)

    # --- Test 1: module-default small shapes, f32, single block -------------
    B, T, in_dim, cls_num = 2, 8, 32, 16
    feats = jax.random.normal(k1, (B, T, in_dim), dtype=jnp.float32)
    params = init_params(k2, in_dim, cls_num)
    pooled, logit = jax.block_until_ready(classifier_forward(feats, params))
    assert pooled.shape == (B, in_dim), pooled.shape
    assert logit.shape == (B, cls_num), logit.shape
    ref_pooled = feats.mean(axis=1)
    ref_logit = ref_pooled @ params["w"] + params["b"]
    assert jnp.allclose(pooled, ref_pooled, rtol=1e-5, atol=1e-5)
    assert jnp.allclose(logit, ref_logit, rtol=2e-4, atol=2e-4)

    # --- Test 2: bf16 feats/weights, partial batch + time blocks (mask path) --
    B, T, in_dim, cls_num = 20, 24, 128, 10
    feats = jax.random.normal(k3, (B, T, in_dim), dtype=jnp.float32).astype(jnp.bfloat16)
    params = init_params(k4, in_dim, cls_num, dtype=jnp.bfloat16)
    pooled, logit = jax.block_until_ready(
        classifier_forward(feats, params, tile_b=8, tile_t=16))
    assert pooled.shape == (B, in_dim), pooled.shape
    assert logit.shape == (B, cls_num), logit.shape
    f32 = lambda a: a.astype(jnp.float32)
    ref_pooled = f32(feats).mean(axis=1)
    ref_logit = ref_pooled @ f32(params["w"]) + f32(params["b"])
    assert bool(jnp.all(jnp.isfinite(logit)))
    assert jnp.allclose(pooled, ref_pooled, rtol=1e-4, atol=1e-4)
    assert jnp.allclose(logit, ref_logit, rtol=3e-2, atol=3e-2)

    print("KERNEL_OK")
</pallas_src>

<mosaic_0001>
module attributes {stable_mosaic.version = 11 : i64} {
  func.func @kernel(%arg0: i32, %arg1: i32, %arg2: memref<2x8x32xf32, #tpu.memory_space<vmem>>, %arg3: memref<32x128xf32, #tpu.memory_space<vmem>>, %arg4: memref<1x128xf32, #tpu.memory_space<vmem>>, %arg5: memref<2x32xf32, #tpu.memory_space<vmem>>, %arg6: memref<2x128xf32, #tpu.memory_space<vmem>>) attributes {dimension_semantics = [#tpu.dimension_semantics<parallel>, #tpu.dimension_semantics<arbitrary>], iteration_bounds = array<i64: 1, 1>, scalar_prefetch = 0 : i64, scratch_operands = 0 : i64, tpu.core_type = #tpu.core_type<tc>, window_params = [{transform_indices = @transform_0, window_bounds = array<i64: 2, 8, 32>}, {pipeline_mode = #tpu.pipeline_mode<synchronous>, transform_indices = @transform_1, window_bounds = array<i64: 32, 128>}, {pipeline_mode = #tpu.pipeline_mode<synchronous>, transform_indices = @transform_2, window_bounds = array<i64: 1, 128>}, {transform_indices = @transform_3, window_bounds = array<i64: 2, 32>}, {transform_indices = @transform_4, window_bounds = array<i64: 2, 128>}]} {
    %c0_i32 = arith.constant 0 : i32
    %0 = arith.cmpi eq, %arg1, %c0_i32 : i32
    %1 = arith.extui %0 : i1 to i32
    %c0_i32_0 = arith.constant 0 : i32
    %2 = arith.cmpi ne, %1, %c0_i32_0 : i32
    scf.if %2 {
      %cst_9 = arith.constant 0.000000e+00 : f32
      %11 = vector.broadcast %cst_9 : f32 to vector<2x32xf32>
      %c0_10 = arith.constant 0 : index
      %c0_11 = arith.constant 0 : index
      %12 = vector.load %arg5[%c0_10, %c0_11] : memref<2x32xf32, #tpu.memory_space<vmem>>, vector<2x32xf32>
      tpu.vector_store %arg5[%c0_10, %c0_11], %11 {strides = array<i32>} : memref<2x32xf32, #tpu.memory_space<vmem>>, vector<2x32xf32>,
    } else {
    }
    %c0 = arith.constant 0 : index
    %c0_1 = arith.constant 0 : index
    %c0_2 = arith.constant 0 : index
    %3 = vector.load %arg2[%c0, %c0_1, %c0_2] : memref<2x8x32xf32, #tpu.memory_space<vmem>>, vector<2x8x32xf32>
    %c0_3 = arith.constant 0 : index
    %c0_4 = arith.constant 0 : index
    %4 = vector.load %arg5[%c0_3, %c0_4] : memref<2x32xf32, #tpu.memory_space<vmem>>, vector<2x32xf32>
    %cst = arith.constant dense<0.000000e+00> : vector<2x32xf32>
    %5 = vector.multi_reduction <add>, %3, %cst [1] : vector<2x8x32xf32> to vector<2x32xf32>
    %6 = arith.addf %4, %5 : vector<2x32xf32>
    %c0_5 = arith.constant 0 : index
    %c0_6 = arith.constant 0 : index
    %7 = vector.load %arg5[%c0_5, %c0_6] : memref<2x32xf32, #tpu.memory_space<vmem>>, vector<2x32xf32>
    tpu.vector_store %arg5[%c0_5, %c0_6], %6 {strides = array<i32>} : memref<2x32xf32, #tpu.memory_space<vmem>>, vector<2x32xf32>,
    %c0_i32_7 = arith.constant 0 : i32
    %8 = arith.cmpi eq, %arg1, %c0_i32_7 : i32
    %9 = arith.extui %8 : i1 to i32
    %c0_i32_8 = arith.constant 0 : i32
    %10 = arith.cmpi ne, %9, %c0_i32_8 : i32
    scf.if %10 {
      %c0_9 = arith.constant 0 : index
      %c0_10 = arith.constant 0 : index
      %11 = vector.load %arg5[%c0_9, %c0_10] : memref<2x32xf32, #tpu.memory_space<vmem>>, vector<2x32xf32>
      %cst_11 = arith.constant 1.250000e-01 : f32
      %12 = vector.broadcast %cst_11 : f32 to vector<2x32xf32>
      %13 = arith.mulf %11, %12 : vector<2x32xf32>
      %c0_12 = arith.constant 0 : index
      %c0_13 = arith.constant 0 : index
      %14 = vector.load %arg5[%c0_12, %c0_13] : memref<2x32xf32, #tpu.memory_space<vmem>>, vector<2x32xf32>
      tpu.vector_store %arg5[%c0_12, %c0_13], %13 {strides = array<i32>} : memref<2x32xf32, #tpu.memory_space<vmem>>, vector<2x32xf32>,
      %c0_14 = arith.constant 0 : index
      %c0_15 = arith.constant 0 : index
      %15 = vector.load %arg3[%c0_14, %c0_15] : memref<32x128xf32, #tpu.memory_space<vmem>>, vector<32x128xf32>
      %cst_16 = arith.constant dense<0.000000e+00> : vector<2x128xf32>
      %16 = tpu.matmul %13, %15, %cst_16 {dimension_numbers = #tpu.dot_dimension_numbers<[1], [0], [0], [1], [0, 0, 1, 1], [], []>} : vector<2x32xf32>, vector<32x128xf32>, vector<2x128xf32> -> vector<2x128xf32>
      %c0_17 = arith.constant 0 : index
      %c0_18 = arith.constant 0 : index
      %17 = vector.load %arg4[%c0_17, %c0_18] : memref<1x128xf32, #tpu.memory_space<vmem>>, vector<1x128xf32>
      %18 = vector.broadcast %17 : vector<1x128xf32> to vector<2x128xf32>
      %19 = arith.addf %16, %18 : vector<2x128xf32>
      %c0_19 = arith.constant 0 : index
      %c0_20 = arith.constant 0 : index
      %20 = vector.load %arg6[%c0_19, %c0_20] : memref<2x128xf32, #tpu.memory_space<vmem>>, vector<2x128xf32>
      tpu.vector_store %arg6[%c0_19, %c0_20], %19 {strides = array<i32>} : memref<2x128xf32, #tpu.memory_space<vmem>>, vector<2x128xf32>,
    } else {
    }
    return
  }
  func.func @transform_0(%arg0: i32, %arg1: i32) -> (i32, i32, i32) {
    %c0_i32 = arith.constant 0 : i32
    %c0_i32_0 = arith.constant 0 : i32
    return %arg0, %arg1, %c0_i32 : i32, i32, i32
  }
  func.func @transform_1(%arg0: i32, %arg1: i32) -> (i32, i32) {
    %c0_i32 = arith.constant 0 : i32
    %c0_i32_0 = arith.constant 0 : i32
    %c0_i32_1 = arith.constant 0 : i32
    return %c0_i32, %c0_i32_0 : i32, i32
  }
  func.func @transform_2(%arg0: i32, %arg1: i32) -> (i32, i32) {
    %c0_i32 = arith.constant 0 : i32
    %c0_i32_0 = arith.constant 0 : i32
    %c0_i32_1 = arith.constant 0 : i32
    return %c0_i32, %c0_i32_0 : i32, i32
  }
  func.func @transform_3(%arg0: i32, %arg1: i32) -> (i32, i32) {
    %c0_i32 = arith.constant 0 : i32
    %c0_i32_0 = arith.constant 0 : i32
    return %arg0, %c0_i32 : i32, i32
  }
  func.func @transform_4(%arg0: i32, %arg1: i32) -> (i32, i32) {
    %c0_i32 = arith.constant 0 : i32
    %c0_i32_0 = arith.constant 0 : i32
    return %arg0, %c0_i32 : i32, i32
  }
}

</mosaic_0001>

<llo_original>
// kernel: tpu_custom_call.1
$region0: #{tpu_custom_call.1}
  #allocation0 [shape = 'u32[]', space=smem, size = 0x4, offset = 0x4, fixed_abs, tag = 'smem constant byte address 0x4 - core index']
  #allocation1 [shape = 'u32[144,128]{1,0:T(1,128)}', space=vmem, size = 0x12000, scoped, tag = 'internal scratch']
  %s0 = inlined_call_operand.hbm [shape: f32[2,8,32], index: 0, kind: input, shape index: {}]
  %s1 = inlined_call_operand.hbm [shape: f32[32,128], index: 1, kind: input, shape index: {}]
  %s2 = inlined_call_operand.vmem [shape: f32[1,128], index: 2, kind: input, shape index: {}]
  %s3 = inlined_call_operand.hbm [shape: f32[2,32], index: 3, kind: output, shape index: {0}]
  %s4 = inlined_call_operand.hbm [shape: f32[2,128], index: 4, kind: output, shape index: {1}]
  %5 = xla_tuple %s3, %s4
  %s6 = sld [smem:[#allocation0]]
  $region46: #{tpu_custom_call.1} parent=0
    _
  %s8 = ssub.s32 1, %s6
  %s9 = scalar_select 0, %s8, %s6
  $region1: #{tpu_custom_call.1} parent=0
    #allocation2 [shape = 'u8[8192]{0}', space=vmem, size = 0x2000, scoped, tag = 'input window, operand 0, single buffered']
    #allocation3 [shape = 's32[1]{0}', space=sflag, size = 0x4, scoped, tag = 'scoped memory for tpu_custom_call.1']
    #allocation4 [shape = 's32[1]{0}', space=sflag, size = 0x4, scoped, tag = 'scoped memory for tpu_custom_call.1']
    #allocation5 [shape = 'u8[16384]{0}', space=vmem, size = 0x4000, scoped, tag = 'input window, operand 1, single buffered']
    #allocation6 [shape = 's32[1]{0}', space=sflag, size = 0x4, scoped, tag = 'scoped memory for tpu_custom_call.1']
    #allocation7 [shape = 'u8[1024]{0}', space=vmem, size = 0x400, scoped, tag = 'output window, operand 0, single buffered']
    #allocation8 [shape = 'u8[1024]{0}', space=vmem, size = 0x400, scoped, tag = 'output window, operand 1, single buffered']
    #allocation9 [shape = 's32[1]{0}', space=sflag, size = 0x4, scoped, tag = 'scoped memory for tpu_custom_call.1']
    %10 = vsyncpa [#allocation3], 0
    %11 = vsyncpa [#allocation6], 0
    %12 = vsyncpa [#allocation4], 0
    %13 = vsyncpa [#allocation9], 0
    // Predicated region
    $region2: #{tpu_custom_call.1} parent=1 // pred_check
      _
    $region3: #{tpu_custom_call.1} parent=1 // pred_check_branch
      %15 = sbr.rel (0) target = $region5
    $region4: #{tpu_custom_call.1} parent=1 // pred_region
      %s17 = ssub.s32 256, 256
      %18 = vsyncadd [#allocation3], %s17
      %s19 = sshll.u32 [#allocation2], 4
      %s20 = int_to_ptr.vmem [resolvable:$true] %s19
      %25 = dma.hbm_to_vmem [thread:$0]  %s0, 256, %s20, [#allocation3], 128, 128, 8
    $region5: #{tpu_custom_call.1} parent=1 // pred_fallthru
      _
    // Predicated region
    $region6: #{tpu_custom_call.1} parent=1 // pred_check
      _
    $region7: #{tpu_custom_call.1} parent=1 // pred_check_branch
      %27 = sbr.rel (0) target = $region9
    $region8: #{tpu_custom_call.1} parent=1 // pred_region
      %s29 = ssub.s32 512, 512
      %30 = vsyncadd [#allocation6], %s29
      %s31 = sshll.u32 [#allocation5], 4
      %s32 = int_to_ptr.vmem [resolvable:$true] %s31
      %37 = dma.hbm_to_vmem [thread:$0]  %s1, 512, %s32, [#allocation6], 128, 128, 8
    $region9: #{tpu_custom_call.1} parent=1 // pred_fallthru
      _
    // Predicated region
    $region10: #{tpu_custom_call.1} parent=1 // pred_check
      _
    $region11: #{tpu_custom_call.1} parent=1 // pred_check_branch
      %39 = sbr.rel (0) target = $region13
    $region12: #{tpu_custom_call.1} parent=1 // pred_region
      _
    $region13: #{tpu_custom_call.1} parent=1 // pred_fallthru
      _
    // Predicated region
    $region14: #{tpu_custom_call.1} parent=1 // pred_check
      _
    $region15: #{tpu_custom_call.1} parent=1 // pred_check_branch
      %41 = sbr.rel (0) target = $region17
    $region16: #{tpu_custom_call.1} parent=1 // pred_region
      %42 = dma.done [#allocation3], 256
    $region17: #{tpu_custom_call.1} parent=1 // pred_fallthru
      _
    // Predicated region
    $region18: #{tpu_custom_call.1} parent=1 // pred_check
      _
    $region19: #{tpu_custom_call.1} parent=1 // pred_check_branch
      %44 = sbr.rel (0) target = $region21
    $region20: #{tpu_custom_call.1} parent=1 // pred_region
      %45 = dma.done [#allocation6], 512
    $region21: #{tpu_custom_call.1} parent=1 // pred_fallthru
      _
    %p46 = scmp.eq.s32.totalorder 0, 0
    // Predicated region
    $region22: #{tpu_custom_call.1} parent=1 // pred_check
      %p47 = pneg %p46
    $region23: #{tpu_custom_call.1} parent=1 // pred_check_branch
      %49 = sbr.rel (%p47) target = $region25
    $region24: #{tpu_custom_call.1} parent=1 // pred_region
      %vm50 = vcmask 254976
      %51 = vst.msk [vmem:[#allocation7] sm:$0x3] %vm50, 0.0
    $region25: #{tpu_custom_call.1} parent=1 // pred_fallthru
      _
    %v52 = vld [vmem:[#allocation2] sm:$0xff]
    %v53 = vld [vmem:[#allocation2 + $0x8] sm:$0xff]
    %v54 = vld [vmem:[#allocation7] sm:$0x3]
    %vm55 = vcmask 261120
    %v56 = vsel %vm55, %v52, 0.0
    %v57 = vrot.slane %v56, 4
    %v58 = vadd.f32 %v56, %v57
    %v59 = vrot.slane %v58, 2
    %v60 = vadd.f32 %v58, %v59
    %v61 = vrot.slane %v60, 1
    %v62 = vadd.f32 %v60, %v61
    %v63 = vsel %vm55, %v53, 0.0
    %v64 = vrot.slane %v63, 4
    %v65 = vadd.f32 %v63, %v64
    %v66 = vrot.slane %v65, 2
    %v67 = vadd.f32 %v65, %v66
    %v68 = vrot.slane %v67, 1
    %v69 = vadd.f32 %v67, %v68
    %vm72 = vcmask 1041409
    %v73 = vsel %vm72, %v69, %v62
    %v75 = vadd.f32 %v54, %v73
    %vm76 = vcmask 254976
    %77 = vst.msk [vmem:[#allocation7] sm:$0x3] %vm76, %v75
    // Predicated region
    $region26: #{tpu_custom_call.1} parent=1 // pred_check
      %p78 = pneg %p46
    $region27: #{tpu_custom_call.1} parent=1 // pred_check_branch
      %80 = sbr.rel (%p78) target = $region29
    $region28: #{tpu_custom_call.1} parent=1 // pred_region
      %v81 = vld [vmem:[#allocation7] sm:$0x3]
      %v82 = vmul.f32 %v81, 0.125
      %83 = vst.msk [vmem:[#allocation7] sm:$0x3] %vm76, %v82
      %v84 = vld [vmem:[#allocation5] sm:$0xff]
      %v85 = vld [vmem:[#allocation5 + $0x8] sm:$0xff]
      %v86 = vld [vmem:[#allocation5 + $0x10] sm:$0xff]
      %v87 = vld [vmem:[#allocation5 + $0x18] sm:$0xff]
      %v88 = vld [vmem:[%s2] sm:$0x1]
      %v90 = vlaneseq
      %v91 = vshrl.u32 %v90, 7
      %v92 = vsub.s32 0, %v91
      %v93 = vrot.slane %v88, %v92
      %v96 = vsel %vm55, %v82, 0
      %98 = vmatprep.subr.mxu0 0.0
      %99 = vmatpush1.msra.mxu0 %v84
      %100 = vmatprep.subr.mxu0 0.0
      %101 = vmatpush1.msra.mxu0 %v85
      %102 = vmatprep.subr.mxu0 0.0
      %103 = vmatpush1.msra.mxu0 %v86
      %104 = vmatprep.subr.mxu0 0.0
      %105 = vmatpush1.msra.mxu0 %v87
      %106 = vmatprep.subr.mxu0 0.0
      %107 = vmatpush1.msra.mxu0 0.0
      %108 = vmatprep.subr.mxu0 0.0
      %109 = vmatpush1.msra.mxu0 0.0
      %110 = vmatprep.subr.mxu0 0.0
      %111 = vmatpush1.msra.mxu0 0.0
      %112 = vmatprep.subr.mxu0 0.0
      %113 = vmatpush1.msra.mxu0 0.0
      %114 = vmatprep.subr.mxu0 0.0
      %115 = vmatpush1.msra.mxu0 0.0
      %116 = vmatprep.subr.mxu0 0.0
      %117 = vmatpush1.msra.mxu0 0.0
      %118 = vmatprep.subr.mxu0 0.0
      %119 = vmatpush1.msra.mxu0 0.0
      %120 = vmatprep.subr.mxu0 0.0
      %121 = vmatpush1.msra.mxu0 0.0
      %122 = vmatprep.subr.mxu0 0.0
      %123 = vmatpush1.msra.mxu0 0.0
      %124 = vmatprep.subr.mxu0 0.0
      %125 = vmatpush1.msra.mxu0 0.0
      %126 = vmatprep.subr.mxu0 0.0
      %127 = vmatpush1.msra.mxu0 0.0
      %128 = vmatprep.subr.mxu0 0.0
      %129 = vmatpush1.msra.mxu0 0.0
      %130 = vmatprep.subr.mxu0 0.0
      %131 = vmatpush1.msra.mxu0 0.0
      %132 = vmatprep.subr.mxu0 0.0
      %133 = vmatpush1.msra.mxu0 0.0
      %134 = vmatprep.subr.mxu0 0.0
      %135 = vmatpush1.msra.mxu0 0.0
      %136 = vmatprep.subr.mxu0 0.0
      %137 = vmatpush1.msra.mxu0 0.0
      %138 = vmatprep.subr.mxu0 0.0
      %139 = vmatpush1.msra.mxu0 0.0
      %140 = vmatprep.subr.mxu0 0.0
      %141 = vmatpush1.msra.mxu0 0.0
      %142 = vmatprep.subr.mxu0 0.0
      %143 = vmatpush1.msra.mxu0 0.0
      %144 = vmatprep.subr.mxu0 0.0
      %145 = vmatpush1.msra.mxu0 0.0
      %146 = vmatprep.subr.mxu0 0.0
      %147 = vmatpush1.msra.mxu0 0.0
      %148 = vmatprep.subr.mxu0 0.0
      %149 = vmatpush1.msra.mxu0 0.0
      %150 = vmatprep.subr.mxu0 0.0
      %151 = vmatpush1.msra.mxu0 0.0
      %152 = vmatprep.subr.mxu0 0.0
      %153 = vmatpush1.msra.mxu0 0.0
      %154 = vmatprep.subr.mxu0 0.0
      %155 = vmatpush1.msra.mxu0 0.0
      %156 = vmatprep.subr.mxu0 0.0
      %157 = vmatpush1.msra.mxu0 0.0
      %158 = vmatprep.subr.mxu0 0.0
      %159 = vmatpush1.msra.mxu0 0.0
      %160 = vmatprep.subr.mxu0 0.0
      %161 = vmatpush1.msra.mxu0 0.0
      %162 = vmatprep.mubr.f32.mxu0 0.0
      %163 = vmatmul.mubr.f32.gmra.mrb[0].mxu0 %v96
      %v164 = vpop.f32.mrb[0].mxu0
      %v165 = vadd.f32 %v93, %v164
      %v166 = vpop.f32.mrb[0].mxu0
      %167 = vdwg.mxu0
      %168 = vst [vmem:[#allocation8] sm:$0x3] %v165
    $region29: #{tpu_custom_call.1} parent=1 // pred_fallthru
      _
    // Predicated region
    $region30: #{tpu_custom_call.1} parent=1 // pred_check
      _
    $region31: #{tpu_custom_call.1} parent=1 // pred_check_branch
      %170 = sbr.rel (0) target = $region33
    $region32: #{tpu_custom_call.1} parent=1 // pred_region
      %s172 = ssub.s32 32, 32
      %173 = vsyncadd [#allocation4], %s172
      %s175 = sshll.u32 [#allocation7], 4
      %s176 = int_to_ptr.vmem [resolvable:$true] %s175
      %178 = dma.vmem_to_hbm [thread:$0]  %s176, 32, %s3, [#allocation4]
    $region33: #{tpu_custom_call.1} parent=1 // pred_fallthru
      _
    // Predicated region
    $region34: #{tpu_custom_call.1} parent=1 // pred_check
      _
    $region35: #{tpu_custom_call.1} parent=1 // pred_check_branch
      %180 = sbr.rel (0) target = $region37
    $region36: #{tpu_custom_call.1} parent=1 // pred_region
      %s182 = ssub.s32 32, 32
      %183 = vsyncadd [#allocation9], %s182
      %s185 = sshll.u32 [#allocation8], 4
      %s186 = int_to_ptr.vmem [resolvable:$true] %s185
      %188 = dma.vmem_to_hbm [thread:$0]  %s186, 32, %s4, [#allocation9]
    $region37: #{tpu_custom_call.1} parent=1 // pred_fallthru
      _
    // Predicated region
    $region38: #{tpu_custom_call.1} parent=1 // pred_check
      _
    $region39: #{tpu_custom_call.1} parent=1 // pred_check_branch
      %190 = sbr.rel (0) target = $region41
    $region40: #{tpu_custom_call.1} parent=1 // pred_region
      %191 = dma.done [#allocation4], 32
    $region41: #{tpu_custom_call.1} parent=1 // pred_fallthru
      _
    // Predicated region
    $region42: #{tpu_custom_call.1} parent=1 // pred_check
      _
    $region43: #{tpu_custom_call.1} parent=1 // pred_check_branch
      %193 = sbr.rel (0) target = $region45
    $region44: #{tpu_custom_call.1} parent=1 // pred_region
      %194 = dma.done [#allocation9], 32
    $region45: #{tpu_custom_call.1} parent=1 // pred_fallthru
      _
    %195 = vsyncpa [#allocation3], 1
    %196 = vsyncpa [#allocation6], 1
    %197 = vsyncpa [#allocation4], 1
    %198 = vsyncpa [#allocation9], 1

</llo_original>
